<compile_context>
chip_gen: v5e
topology: v5e:2x2
jax: 0.10.0
libtpu: 0.0.40
codegen_flags: <defaults>
</compile_context>

<pallas_src>
import functools

import jax
import jax.numpy as jnp
from jax.experimental import pallas as pl
from jax.experimental.pallas import tpu as pltpu


def _round_up(x, m):
    return ((x + m - 1) // m) * m


def actor_kernel(action_range, a_pad,
                 state_ref, w1_ref, b1_ref, wh_ref, bh_ref,
                 mean_ref, dev_ref):
    # state tile: (dim_obs, TILE_B) — batch on the 128-wide lane axis.
    # Weights/biases use constant index_maps, so they stay VMEM-resident.
    x = state_ref[...]

    # layer1 + relu: (H_pad, dim_obs) @ (dim_obs, TILE_B) -> (H_pad, TILE_B)
    h = jnp.dot(w1_ref[...], x, preferred_element_type=jnp.float32) + b1_ref[...]
    h = jnp.maximum(h, 0.0)

    # fused heads: (2*A_pad, H_pad) @ (H_pad, TILE_B) -> (2*A_pad, TILE_B)
    z = jnp.dot(wh_ref[...], h, preferred_element_type=jnp.float32) + bh_ref[...]

    # Sublane-aligned split (a_pad is a multiple of 8): transcendentals only
    # touch the rows that need them, and each store is a full lane-dense tile.
    zm = z[:a_pad, :]                       # mean head rows
    zd = z[a_pad:, :]                       # deviation head rows

    mean_ref[...] = (jnp.tanh(zm) * action_range).astype(mean_ref.dtype)
    # numerically stable softplus(zd) + 0.001
    dev_ref[...] = (jnp.maximum(zd, 0.0) + jnp.log1p(jnp.exp(-jnp.abs(zd)))
                    + 0.001).astype(dev_ref.dtype)


def prepare_actor_params(params):
    """One-time weight preparation (hoisted out of the forward path).

    params: (w1 (dim_obs, H), b1 (H,), wm (H, A), bm (A,), wd (H, A), bd (A,))
    Returns ((w1k, b1k, whk, bhk), a_pad) in the kernel's batch-in-lanes layout:
      w1k (H_pad, dim_obs), b1k (H_pad, 1), whk (2*A_pad, H_pad), bhk (2*A_pad, 1)
    """
    w1, b1, wm, bm, wd, bd = params
    dim_obs, H = w1.shape
    A = wm.shape[1]
    H_pad = _round_up(H, 128)               # 100 -> 128
    A_pad = _round_up(A, 8)                 # per-head sublane alignment

    w1k = jnp.zeros((H_pad, dim_obs), jnp.float32).at[:H, :].set(w1.T)
    b1k = jnp.zeros((H_pad, 1), jnp.float32).at[:H, 0].set(b1)
    whk = (jnp.zeros((2 * A_pad, H_pad), jnp.float32)
           .at[:A, :H].set(wm.T)
           .at[A_pad:A_pad + A, :H].set(wd.T))
    bhk = (jnp.zeros((2 * A_pad, 1), jnp.float32)
           .at[:A, 0].set(bm)
           .at[A_pad:A_pad + A, 0].set(bd))
    return (w1k, b1k, whk, bhk), A_pad


def actor_net_forward(state, kernel_params, a_pad, n_actions, action_range,
                      tile_b=8192):
    """state: (B, dim_obs) float32 -> (mean (B, A), deviation (B, A))."""
    w1k, b1k, whk, bhk = kernel_params
    B, dim_obs = state.shape
    H_pad = w1k.shape[0]

    # --- batch tiling: batch lives on the lane axis, tile multiple of 128 ----
    tile = _round_up(min(tile_b, _round_up(B, 128)), 128)
    tile = min(tile, 16384)       # keep the (H_pad, tile) f32 hidden temp VMEM-safe (v7x)
    B_pad = _round_up(B, tile)
    if B_pad == tile and B > 128:
        # make sure the grid has >= 2 steps so megacore (v7x) can split the batch
        tile = _round_up((B + 1) // 2, 128)
        B_pad = 2 * tile
    grid = (B_pad // tile,)

    # transpose to batch-in-lanes and zero-pad the batch to the tile
    state_t = jnp.zeros((dim_obs, B_pad), jnp.float32).at[:, :B].set(state.T)

    kernel = functools.partial(actor_kernel, float(action_range), a_pad)

    mean_t, dev_t = pl.pallas_call(
        kernel,
        grid=grid,
        out_shape=(
            jax.ShapeDtypeStruct((a_pad, B_pad), jnp.float32),
            jax.ShapeDtypeStruct((a_pad, B_pad), jnp.float32),
        ),
        in_specs=[
            pl.BlockSpec((dim_obs, tile), lambda i: (0, i)),      # streamed state
            pl.BlockSpec((H_pad, dim_obs), lambda i: (0, 0)),     # resident w1
            pl.BlockSpec((H_pad, 1), lambda i: (0, 0)),           # resident b1
            pl.BlockSpec((2 * a_pad, H_pad), lambda i: (0, 0)),   # resident fused heads
            pl.BlockSpec((2 * a_pad, 1), lambda i: (0, 0)),       # resident fused bias
        ],
        out_specs=(
            pl.BlockSpec((a_pad, tile), lambda i: (0, i)),        # mean (lane-dense)
            pl.BlockSpec((a_pad, tile), lambda i: (0, i)),        # deviation (lane-dense)
        ),
        compiler_params=pltpu.CompilerParams(
            dimension_semantics=("parallel",)),                   # megacore on v7x
    )(state_t, w1k, b1k, whk, bhk)

    mean = mean_t[:n_actions, :B].T
    deviation = dev_t[:n_actions, :B].T
    return mean, deviation


def init_params(key, dim_obs, dim_actions, hidden=100):
    """Deterministic init mimicking torch.nn.Linear's uniform(-1/sqrt(fan_in), ...)."""
    ks = jax.random.split(key, 6)

    def lin(kw, kb, fan_in, fan_out):
        bound = 1.0 / jnp.sqrt(fan_in)
        w = jax.random.uniform(kw, (fan_in, fan_out), jnp.float32, -bound, bound)
        b = jax.random.uniform(kb, (fan_out,), jnp.float32, -bound, bound)
        return w, b

    w1, b1 = lin(ks[0], ks[1], dim_obs, hidden)
    wm, bm = lin(ks[2], ks[3], hidden, dim_actions)
    wd, bd = lin(ks[4], ks[5], hidden, dim_actions)
    return (w1, b1, wm, bm, wd, bd)


if __name__ == "__main__":
    key = jax.random.PRNGKey(0)
    k_state, k_params = jax.random.split(key)

    B, DIM_OBS, DIM_ACTIONS, ACTION_RANGE = 2, 8, 4, 2.0

    state = jax.random.normal(k_state, (B, DIM_OBS), dtype=jnp.float32)
    params = init_params(k_params, DIM_OBS, DIM_ACTIONS)

    # weight prep hoisted out of the forward path (done once per param update)
    kernel_params, a_pad = prepare_actor_params(params)
    kernel_params = jax.block_until_ready(kernel_params)

    fwd = jax.jit(functools.partial(
        actor_net_forward, a_pad=a_pad, n_actions=DIM_ACTIONS,
        action_range=ACTION_RANGE))

    mean, deviation = fwd(state, kernel_params)
    jax.block_until_ready((mean, deviation))

    # Pure-JAX reference check.
    w1, b1, wm, bm, wd, bd = params
    h_ref = jnp.maximum(state @ w1 + b1, 0.0)
    mean_ref = jnp.tanh(h_ref @ wm + bm) * ACTION_RANGE
    dev_ref = jax.nn.softplus(h_ref @ wd + bd) + 0.001
    assert mean.shape == (B, DIM_ACTIONS) and deviation.shape == (B, DIM_ACTIONS)
    assert jnp.allclose(mean, mean_ref, atol=1e-4), "mean mismatch"
    assert jnp.allclose(deviation, dev_ref, atol=1e-4), "deviation mismatch"

    # TODO(synk): optional bf16 casts for the MXU matmuls (v6e/v7x only) left
    # out to keep bit-level parity with the f32 PyTorch reference on all chips.

    print("KERNEL_OK")
</pallas_src>

<mosaic_0001>
module attributes {stable_mosaic.version = 11 : i64} {
  func.func @actor_kernel(%arg0: i32, %arg1: memref<8x128xf32, #tpu.memory_space<vmem>>, %arg2: memref<128x8xf32, #tpu.memory_space<vmem>>, %arg3: memref<128x1xf32, #tpu.memory_space<vmem>>, %arg4: memref<16x128xf32, #tpu.memory_space<vmem>>, %arg5: memref<16x1xf32, #tpu.memory_space<vmem>>, %arg6: memref<8x128xf32, #tpu.memory_space<vmem>>, %arg7: memref<8x128xf32, #tpu.memory_space<vmem>>) attributes {dimension_semantics = [#tpu.dimension_semantics<parallel>], iteration_bounds = array<i64: 1>, scalar_prefetch = 0 : i64, scratch_operands = 0 : i64, tpu.core_type = #tpu.core_type<tc>, window_params = [{transform_indices = @transform_0, window_bounds = array<i64: 8, 128>}, {pipeline_mode = #tpu.pipeline_mode<synchronous>, transform_indices = @transform_1, window_bounds = array<i64: 128, 8>}, {pipeline_mode = #tpu.pipeline_mode<synchronous>, transform_indices = @transform_2, window_bounds = array<i64: 128, 1>}, {pipeline_mode = #tpu.pipeline_mode<synchronous>, transform_indices = @transform_3, window_bounds = array<i64: 16, 128>}, {pipeline_mode = #tpu.pipeline_mode<synchronous>, transform_indices = @transform_4, window_bounds = array<i64: 16, 1>}, {transform_indices = @transform_5, window_bounds = array<i64: 8, 128>}, {transform_indices = @transform_6, window_bounds = array<i64: 8, 128>}]} {
    %c0 = arith.constant 0 : index
    %c0_0 = arith.constant 0 : index
    %0 = vector.load %arg1[%c0, %c0_0] : memref<8x128xf32, #tpu.memory_space<vmem>>, vector<8x128xf32>
    %c0_1 = arith.constant 0 : index
    %c0_2 = arith.constant 0 : index
    %1 = vector.load %arg2[%c0_1, %c0_2] : memref<128x8xf32, #tpu.memory_space<vmem>>, vector<128x8xf32>
    %cst = arith.constant dense<0.000000e+00> : vector<128x128xf32>
    %2 = tpu.matmul %1, %0, %cst {dimension_numbers = #tpu.dot_dimension_numbers<[1], [0], [0], [1], [0, 0, 1, 1], [], []>} : vector<128x8xf32>, vector<8x128xf32>, vector<128x128xf32> -> vector<128x128xf32>
    %c0_3 = arith.constant 0 : index
    %c0_4 = arith.constant 0 : index
    %3 = vector.load %arg3[%c0_3, %c0_4] : memref<128x1xf32, #tpu.memory_space<vmem>>, vector<128x1xf32>
    %4 = vector.broadcast %3 : vector<128x1xf32> to vector<128x128xf32>
    %5 = arith.addf %2, %4 : vector<128x128xf32>
    %cst_5 = arith.constant 0.000000e+00 : f32
    %6 = vector.broadcast %cst_5 : f32 to vector<128x128xf32>
    %7 = arith.maximumf %5, %6 : vector<128x128xf32>
    %c0_6 = arith.constant 0 : index
    %c0_7 = arith.constant 0 : index
    %8 = vector.load %arg4[%c0_6, %c0_7] : memref<16x128xf32, #tpu.memory_space<vmem>>, vector<16x128xf32>
    %cst_8 = arith.constant dense<0.000000e+00> : vector<16x128xf32>
    %9 = tpu.matmul %8, %7, %cst_8 {dimension_numbers = #tpu.dot_dimension_numbers<[1], [0], [0], [1], [0, 0, 1, 1], [], []>} : vector<16x128xf32>, vector<128x128xf32>, vector<16x128xf32> -> vector<16x128xf32>
    %c0_9 = arith.constant 0 : index
    %c0_10 = arith.constant 0 : index
    %10 = vector.load %arg5[%c0_9, %c0_10] : memref<16x1xf32, #tpu.memory_space<vmem>>, vector<16x1xf32>
    %11 = vector.broadcast %10 : vector<16x1xf32> to vector<16x128xf32>
    %12 = arith.addf %9, %11 : vector<16x128xf32>
    %13 = vector.extract_strided_slice %12 {offsets = [0, 0], sizes = [8, 128], strides = [1, 1]} : vector<16x128xf32> to vector<8x128xf32>
    %14 = vector.extract_strided_slice %12 {offsets = [8, 0], sizes = [8, 128], strides = [1, 1]} : vector<16x128xf32> to vector<8x128xf32>
    %15 = math.tanh %13 : vector<8x128xf32>
    %cst_11 = arith.constant 2.000000e+00 : f32
    %16 = vector.broadcast %cst_11 : f32 to vector<8x128xf32>
    %17 = arith.mulf %15, %16 : vector<8x128xf32>
    %c0_12 = arith.constant 0 : index
    %c0_13 = arith.constant 0 : index
    %18 = vector.load %arg6[%c0_12, %c0_13] : memref<8x128xf32, #tpu.memory_space<vmem>>, vector<8x128xf32>
    tpu.vector_store %arg6[%c0_12, %c0_13], %17 {strides = array<i32>} : memref<8x128xf32, #tpu.memory_space<vmem>>, vector<8x128xf32>,
    %cst_14 = arith.constant 0.000000e+00 : f32
    %19 = vector.broadcast %cst_14 : f32 to vector<8x128xf32>
    %20 = arith.maximumf %14, %19 : vector<8x128xf32>
    %21 = math.absf %14 : vector<8x128xf32>
    %cst_15 = arith.constant 0.000000e+00 : f32
    %22 = vector.broadcast %cst_15 : f32 to vector<8x128xf32>
    %23 = arith.subf %22, %21 : vector<8x128xf32>
    %24 = math.exp %23 : vector<8x128xf32>
    %25 = math.log1p %24 : vector<8x128xf32>
    %26 = arith.addf %20, %25 : vector<8x128xf32>
    %cst_16 = arith.constant 1.000000e-03 : f32
    %27 = vector.broadcast %cst_16 : f32 to vector<8x128xf32>
    %28 = arith.addf %26, %27 : vector<8x128xf32>
    %c0_17 = arith.constant 0 : index
    %c0_18 = arith.constant 0 : index
    %29 = vector.load %arg7[%c0_17, %c0_18] : memref<8x128xf32, #tpu.memory_space<vmem>>, vector<8x128xf32>
    tpu.vector_store %arg7[%c0_17, %c0_18], %28 {strides = array<i32>} : memref<8x128xf32, #tpu.memory_space<vmem>>, vector<8x128xf32>,
    return
  }
  func.func @transform_0(%arg0: i32) -> (i32, i32) {
    %c0_i32 = arith.constant 0 : i32
    %c0_i32_0 = arith.constant 0 : i32
    return %c0_i32, %arg0 : i32, i32
  }
  func.func @transform_1(%arg0: i32) -> (i32, i32) {
    %c0_i32 = arith.constant 0 : i32
    %c0_i32_0 = arith.constant 0 : i32
    %c0_i32_1 = arith.constant 0 : i32
    return %c0_i32, %c0_i32_0 : i32, i32
  }
  func.func @transform_2(%arg0: i32) -> (i32, i32) {
    %c0_i32 = arith.constant 0 : i32
    %c0_i32_0 = arith.constant 0 : i32
    %c0_i32_1 = arith.constant 0 : i32
    return %c0_i32, %c0_i32_0 : i32, i32
  }
  func.func @transform_3(%arg0: i32) -> (i32, i32) {
    %c0_i32 = arith.constant 0 : i32
    %c0_i32_0 = arith.constant 0 : i32
    %c0_i32_1 = arith.constant 0 : i32
    return %c0_i32, %c0_i32_0 : i32, i32
  }
  func.func @transform_4(%arg0: i32) -> (i32, i32) {
    %c0_i32 = arith.constant 0 : i32
    %c0_i32_0 = arith.constant 0 : i32
    %c0_i32_1 = arith.constant 0 : i32
    return %c0_i32, %c0_i32_0 : i32, i32
  }
  func.func @transform_5(%arg0: i32) -> (i32, i32) {
    %c0_i32 = arith.constant 0 : i32
    %c0_i32_0 = arith.constant 0 : i32
    return %c0_i32, %arg0 : i32, i32
  }
  func.func @transform_6(%arg0: i32) -> (i32, i32) {
    %c0_i32 = arith.constant 0 : i32
    %c0_i32_0 = arith.constant 0 : i32
    return %c0_i32, %arg0 : i32, i32
  }
}

</mosaic_0001>

<llo_original>
// kernel: actor_net_forward.1
$region0: #{actor_net_forward.1}
  #allocation0 [shape = 'u32[]', space=smem, size = 0x4, offset = 0x4, fixed_abs, tag = 'smem constant byte address 0x4 - core index']
  #allocation1 [shape = 'u32[72,128]{1,0:T(1,128)}', space=vmem, size = 0x9000, scoped, tag = 'internal scratch']
  %s0 = inlined_call_operand.vmem [shape: f32[8,128], index: 0, kind: input, shape index: {}]
  %s1 = inlined_call_operand.vmem [shape: f32[128,8], index: 1, kind: input, shape index: {}]
  %s2 = inlined_call_operand.vmem [shape: f32[128,1], index: 2, kind: input, shape index: {}]
  %s3 = inlined_call_operand.vmem [shape: f32[16,128], index: 3, kind: input, shape index: {}]
  %s4 = inlined_call_operand.vmem [shape: f32[16,1], index: 4, kind: input, shape index: {}]
  %s5 = inlined_call_operand.vmem [shape: f32[8,128], index: 5, kind: output, shape index: {0}]
  %s6 = inlined_call_operand.vmem [shape: f32[8,128], index: 6, kind: output, shape index: {1}]
  %7 = xla_tuple %s5, %s6
  %s8 = sld [smem:[#allocation0]]
  $region38: #{actor_net_forward.1} parent=0
    _
  %s10 = ssub.s32 1, %s8
  %s11 = scalar_select 0, %s10, %s8
  // Predicated region
  $region2: #{actor_net_forward.1} parent=0 // pred_check
    _
  $region3: #{actor_net_forward.1} parent=0 // pred_check_branch
    %13 = sbr.rel (0) target = $region5
  $region4: #{actor_net_forward.1} parent=0 // pred_region
    _
  $region5: #{actor_net_forward.1} parent=0 // pred_fallthru
    _
  // Predicated region
  $region6: #{actor_net_forward.1} parent=0 // pred_check
    _
  $region7: #{actor_net_forward.1} parent=0 // pred_check_branch
    %15 = sbr.rel (0) target = $region9
  $region8: #{actor_net_forward.1} parent=0 // pred_region
    _
  $region9: #{actor_net_forward.1} parent=0 // pred_fallthru
    _
  // Predicated region
  $region10: #{actor_net_forward.1} parent=0 // pred_check
    _
  $region11: #{actor_net_forward.1} parent=0 // pred_check_branch
    %17 = sbr.rel (0) target = $region13
  $region12: #{actor_net_forward.1} parent=0 // pred_region
    _
  $region13: #{actor_net_forward.1} parent=0 // pred_fallthru
    _
  // Predicated region
  $region14: #{actor_net_forward.1} parent=0 // pred_check
    _
  $region15: #{actor_net_forward.1} parent=0 // pred_check_branch
    %19 = sbr.rel (0) target = $region17
  $region16: #{actor_net_forward.1} parent=0 // pred_region
    _
  $region17: #{actor_net_forward.1} parent=0 // pred_fallthru
    _
  // Predicated region
  $region18: #{actor_net_forward.1} parent=0 // pred_check
    _
  $region19: #{actor_net_forward.1} parent=0 // pred_check_branch
    %21 = sbr.rel (0) target = $region21
  $region20: #{actor_net_forward.1} parent=0 // pred_region
    _
  $region21: #{actor_net_forward.1} parent=0 // pred_fallthru
    _
  %v22 = vld [vmem:[%s0] sm:$0xff]
  %v23 = vld [vmem:[%s1] sm:$0xff]
  %v24 = vld [vmem:[%s1 + $0x8] sm:$0xff]
  %v25 = vld [vmem:[%s1 + $0x10] sm:$0xff]
  %v26 = vld [vmem:[%s1 + $0x18] sm:$0xff]
  %v27 = vld [vmem:[%s1 + $0x20] sm:$0xff]
  %v28 = vld [vmem:[%s1 + $0x28] sm:$0xff]
  %v29 = vld [vmem:[%s1 + $0x30] sm:$0xff]
  %v30 = vld [vmem:[%s1 + $0x38] sm:$0xff]
  %v31 = vld [vmem:[%s1 + $0x40] sm:$0xff]
  %v32 = vld [vmem:[%s1 + $0x48] sm:$0xff]
  %v33 = vld [vmem:[%s1 + $0x50] sm:$0xff]
  %v34 = vld [vmem:[%s1 + $0x58] sm:$0xff]
  %v35 = vld [vmem:[%s1 + $0x60] sm:$0xff]
  %v36 = vld [vmem:[%s1 + $0x68] sm:$0xff]
  %v37 = vld [vmem:[%s1 + $0x70] sm:$0xff]
  %v38 = vld [vmem:[%s1 + $0x78] sm:$0xff]
  %v39 = vld [vmem:[%s2] sm:$0xff]
  %v40 = vld [vmem:[%s2 + $0x8] sm:$0xff]
  %v41 = vld [vmem:[%s2 + $0x10] sm:$0xff]
  %v42 = vld [vmem:[%s2 + $0x18] sm:$0xff]
  %v43 = vld [vmem:[%s2 + $0x20] sm:$0xff]
  %v44 = vld [vmem:[%s2 + $0x28] sm:$0xff]
  %v45 = vld [vmem:[%s2 + $0x30] sm:$0xff]
  %v46 = vld [vmem:[%s2 + $0x38] sm:$0xff]
  %v47 = vld [vmem:[%s2 + $0x40] sm:$0xff]
  %v48 = vld [vmem:[%s2 + $0x48] sm:$0xff]
  %v49 = vld [vmem:[%s2 + $0x50] sm:$0xff]
  %v50 = vld [vmem:[%s2 + $0x58] sm:$0xff]
  %v51 = vld [vmem:[%s2 + $0x60] sm:$0xff]
  %v52 = vld [vmem:[%s2 + $0x68] sm:$0xff]
  %v53 = vld [vmem:[%s2 + $0x70] sm:$0xff]
  %v54 = vld [vmem:[%s2 + $0x78] sm:$0xff]
  %56 = vset.pattern.permute.xlu0 0
  %57 = vperm.xlu0 %56, %v39
  %v58 = vpop.permute.xlu0 %57
  %61 = vset.pattern.permute.xlu0 0
  %62 = vperm.xlu0 %61, %v40
  %v63 = vpop.permute.xlu0 %62
  %66 = vset.pattern.permute.xlu0 0
  %67 = vperm.xlu0 %66, %v41
  %v68 = vpop.permute.xlu0 %67
  %71 = vset.pattern.permute.xlu0 0
  %72 = vperm.xlu0 %71, %v42
  %v73 = vpop.permute.xlu0 %72
  %76 = vset.pattern.permute.xlu0 0
  %77 = vperm.xlu0 %76, %v43
  %v78 = vpop.permute.xlu0 %77
  %81 = vset.pattern.permute.xlu0 0
  %82 = vperm.xlu0 %81, %v44
  %v83 = vpop.permute.xlu0 %82
  %86 = vset.pattern.permute.xlu0 0
  %87 = vperm.xlu0 %86, %v45
  %v88 = vpop.permute.xlu0 %87
  %91 = vset.pattern.permute.xlu0 0
  %92 = vperm.xlu0 %91, %v46
  %v93 = vpop.permute.xlu0 %92
  %96 = vset.pattern.permute.xlu0 0
  %97 = vperm.xlu0 %96, %v47
  %v98 = vpop.permute.xlu0 %97
  %101 = vset.pattern.permute.xlu0 0
  %102 = vperm.xlu0 %101, %v48
  %v103 = vpop.permute.xlu0 %102
  %106 = vset.pattern.permute.xlu0 0
  %107 = vperm.xlu0 %106, %v49
  %v108 = vpop.permute.xlu0 %107
  %111 = vset.pattern.permute.xlu0 0
  %112 = vperm.xlu0 %111, %v50
  %v113 = vpop.permute.xlu0 %112
  %116 = vset.pattern.permute.xlu0 0
  %117 = vperm.xlu0 %116, %v51
  %v118 = vpop.permute.xlu0 %117
  %121 = vset.pattern.permute.xlu0 0
  %122 = vperm.xlu0 %121, %v52
  %v123 = vpop.permute.xlu0 %122
  %126 = vset.pattern.permute.xlu0 0
  %127 = vperm.xlu0 %126, %v53
  %v128 = vpop.permute.xlu0 %127
  %131 = vset.pattern.permute.xlu0 0
  %132 = vperm.xlu0 %131, %v54
  %v133 = vpop.permute.xlu0 %132
  %vm135 = vcmask 64512
  %v137 = vsel %vm135, %v23, 0
  %v140 = vsel %vm135, %v24, 0
  %v143 = vsel %vm135, %v25, 0
  %v146 = vsel %vm135, %v26, 0
  %v149 = vsel %vm135, %v27, 0
  %v152 = vsel %vm135, %v28, 0
  %v155 = vsel %vm135, %v29, 0
  %v158 = vsel %vm135, %v30, 0
  %v161 = vsel %vm135, %v31, 0
  %v164 = vsel %vm135, %v32, 0
  %v167 = vsel %vm135, %v33, 0
  %v170 = vsel %vm135, %v34, 0
  %v173 = vsel %vm135, %v35, 0
  %v176 = vsel %vm135, %v36, 0
  %v179 = vsel %vm135, %v37, 0
  %v182 = vsel %vm135, %v38, 0
  %184 = vmatpush.msra.mxu0 0.0
  %185 = vmatpush.msra.mxu0 0.0
  %186 = vmatpush.msra.mxu0 0.0
  %187 = vmatpush.msra.mxu0 0.0
  %188 = vmatpush.msra.mxu0 0.0
  %189 = vmatpush.msra.mxu0 0.0
  %190 = vmatpush.msra.mxu0 0.0
  %191 = vmatpush.msra.mxu0 0.0
  %192 = vmatpush.msra.mxu0 0.0
  %193 = vmatpush.msra.mxu0 0.0
  %194 = vmatpush.msra.mxu0 0.0
  %195 = vmatpush.msra.mxu0 0.0
  %196 = vmatpush.msra.mxu0 0.0
  %197 = vmatpush.msra.mxu0 0.0
  %198 = vmatpush.msra.mxu0 0.0
  %199 = vmatpush.msra.mxu0 %v22
  %200 = vmatmul.f32.gmra.mxu0 %v137
  %v201 = vpop.f32.mrf.mxu0
  %v202 = vadd.f32 %v58, %v201
  %203 = vmatmul.f32.gmra.mxu0 %v140
  %v204 = vpop.f32.mrf.mxu0
  %v205 = vadd.f32 %v63, %v204
  %206 = vmatmul.f32.gmra.mxu0 %v143
  %v207 = vpop.f32.mrf.mxu0
  %v208 = vadd.f32 %v68, %v207
  %209 = vmatmul.f32.gmra.mxu0 %v146
  %v210 = vpop.f32.mrf.mxu0
  %v211 = vadd.f32 %v73, %v210
  %212 = vmatmul.f32.gmra.mxu0 %v149
  %v213 = vpop.f32.mrf.mxu0
  %v214 = vadd.f32 %v78, %v213
  %215 = vmatmul.f32.gmra.mxu0 %v152
  %v216 = vpop.f32.mrf.mxu0
  %v217 = vadd.f32 %v83, %v216
  %218 = vmatmul.f32.gmra.mxu0 %v155
  %v219 = vpop.f32.mrf.mxu0
  %v220 = vadd.f32 %v88, %v219
  %221 = vmatmul.f32.gmra.mxu0 %v158
  %v222 = vpop.f32.mrf.mxu0
  %v223 = vadd.f32 %v93, %v222
  %224 = vmatmul.f32.gmra.mxu0 %v161
  %v225 = vpop.f32.mrf.mxu0
  %v226 = vadd.f32 %v98, %v225
  %227 = vmatmul.f32.gmra.mxu0 %v164
  %v228 = vpop.f32.mrf.mxu0
  %v229 = vadd.f32 %v103, %v228
  %230 = vmatmul.f32.gmra.mxu0 %v167
  %v231 = vpop.f32.mrf.mxu0
  %v232 = vadd.f32 %v108, %v231
  %233 = vmatmul.f32.gmra.mxu0 %v170
  %v234 = vpop.f32.mrf.mxu0
  %v235 = vadd.f32 %v113, %v234
  %236 = vmatmul.f32.gmra.mxu0 %v173
  %v237 = vpop.f32.mrf.mxu0
  %v238 = vadd.f32 %v118, %v237
  %239 = vmatmul.f32.gmra.mxu0 %v176
  %v240 = vpop.f32.mrf.mxu0
  %v241 = vadd.f32 %v123, %v240
  %242 = vmatmul.f32.gmra.mxu0 %v179
  %v243 = vpop.f32.mrf.mxu0
  %v244 = vadd.f32 %v128, %v243
  %245 = vmatmul.f32.gmra.mxu0 %v182
  %v246 = vpop.f32.mrf.mxu0
  %v247 = vadd.f32 %v133, %v246
  %248 = vdwg.mxu0
  %v249 = vmax.f32 %v202, 0.0
  %v250 = vmax.f32 %v205, 0.0
  %v251 = vmax.f32 %v208, 0.0
  %v252 = vmax.f32 %v211, 0.0
  %v253 = vmax.f32 %v214, 0.0
  %v254 = vmax.f32 %v217, 0.0
  %v255 = vmax.f32 %v220, 0.0
  %v256 = vmax.f32 %v223, 0.0
  %v257 = vmax.f32 %v226, 0.0
  %v258 = vmax.f32 %v229, 0.0
  %v259 = vmax.f32 %v232, 0.0
  %v260 = vmax.f32 %v235, 0.0
  %v261 = vmax.f32 %v238, 0.0
  %v262 = vmax.f32 %v241, 0.0
  %v263 = vmax.f32 %v244, 0.0
  %v264 = vmax.f32 %v247, 0.0
  %v265 = vld [vmem:[%s3] sm:$0xff]
  %v266 = vld [vmem:[%s3 + $0x8] sm:$0xff]
  %v267 = vld [vmem:[%s4] sm:$0xff]
  %v268 = vld [vmem:[%s4 + $0x8] sm:$0xff]
  %270 = vset.pattern.permute.xlu0 0
  %271 = vperm.xlu0 %270, %v267
  %v272 = vpop.permute.xlu0 %271
  %275 = vset.pattern.permute.xlu0 0
  %276 = vperm.xlu0 %275, %v268
  %v277 = vpop.permute.xlu0 %276
  %279 = vmatpush.msra.mxu0 %v264
  %280 = vmatpush.msra.mxu0 %v263
  %281 = vmatpush.msra.mxu0 %v262
  %282 = vmatpush.msra.mxu0 %v261
  %283 = vmatpush.msra.mxu0 %v260
  %284 = vmatpush.msra.mxu0 %v259
  %285 = vmatpush.msra.mxu0 %v258
  %286 = vmatpush.msra.mxu0 %v257
  %287 = vmatpush.msra.mxu0 %v256
  %288 = vmatpush.msra.mxu0 %v255
  %289 = vmatpush.msra.mxu0 %v254
  %290 = vmatpush.msra.mxu0 %v253
  %291 = vmatpush.msra.mxu0 %v252
  %292 = vmatpush.msra.mxu0 %v251
  %293 = vmatpush.msra.mxu0 %v250
  %294 = vmatpush.msra.mxu0 %v249
  %295 = vmatmul.f32.gmra.mxu0 %v265
  %v296 = vpop.f32.mrf.mxu0
  %v297 = vadd.f32 %v272, %v296
  %298 = vmatmul.f32.gmra.mxu0 %v266
  %v299 = vpop.f32.mrf.mxu0
  %v300 = vadd.f32 %v277, %v299
  %301 = vdwg.mxu0
  %v302 = vtanh.pop %v297
  %v303 = vmul.f32 %v302, 2.0
  %304 = vst [vmem:[%s5] sm:$0xff] %v303
  %v305 = vmax.f32 %v300, 0.0
  %v306 = vand.u32 2147483647, %v300
  %v307 = vsub.f32 0.0, %v306
  %v308 = vmul.f32 %v307, 1.442695
  %v309 = vpow.pop %v308
  %v310 = vadd.f32 %v309, 1.0
  %v311 = vlog2.pop %v310
  %v312 = vmul.f32 %v311, 0.6931472
  %v313 = vmul.f32 -0.5, %v309
  %v314 = vadd.f32 %v313, 1.0
  %v315 = vmul.f32 %v314, %v309
  %v316 = vand.u32 2147483647, %v309
  %vm317 = vcmp.lt.f32.partialorder %v316, 0.0004427343
  %v318 = vsel %vm317, %v315, %v312
  %v319 = vadd.f32 %v305, %v318
  %v320 = vadd.f32 %v319, 0.001
  %321 = vst [vmem:[%s6] sm:$0xff] %v320
  // Predicated region
  $region22: #{actor_net_forward.1} parent=0 // pred_check
    _
  $region23: #{actor_net_forward.1} parent=0 // pred_check_branch
    %323 = sbr.rel (0) target = $region25
  $region24: #{actor_net_forward.1} parent=0 // pred_region
    _
  $region25: #{actor_net_forward.1} parent=0 // pred_fallthru
    _
  // Predicated region
  $region26: #{actor_net_forward.1} parent=0 // pred_check
    _
  $region27: #{actor_net_forward.1} parent=0 // pred_check_branch
    %325 = sbr.rel (0) target = $region29
  $region28: #{actor_net_forward.1} parent=0 // pred_region
    _
  $region29: #{actor_net_forward.1} parent=0 // pred_fallthru
    _
  // Predicated region
  $region30: #{actor_net_forward.1} parent=0 // pred_check
    _
  $region31: #{actor_net_forward.1} parent=0 // pred_check_branch
    %327 = sbr.rel (0) target = $region33
  $region32: #{actor_net_forward.1} parent=0 // pred_region
    _
  $region33: #{actor_net_forward.1} parent=0 // pred_fallthru
    _
  // Predicated region
  $region34: #{actor_net_forward.1} parent=0 // pred_check
    _
  $region35: #{actor_net_forward.1} parent=0 // pred_check_branch
    %329 = sbr.rel (0) target = $region37
  $region36: #{actor_net_forward.1} parent=0 // pred_region
    _
  $region37: #{actor_net_forward.1} parent=0 // pred_fallthru
    _

</llo_original>
